<compile_context>
chip_gen: v6e
topology: v6e:2x2x1
jax: 0.10.0
libtpu: 0.0.40
codegen_flags: <defaults>
</compile_context>

<pallas_src>
import math

import jax
import jax.numpy as jnp
from jax.experimental import pallas as pl
from jax.experimental.pallas import tpu as pltpu


def _mlp_kernel(x_ref,                # VMEM (TB, in)   bf16
                m1_ref, m2_ref,       # VMEM (TB, H), (TB, H2)  f32 (0.0 / 2.0)
                w1_ref, b1_ref,       # VMEM (in, H) bf16, (1, H) f32
                w2_ref, b2_ref,       # VMEM (H, H2) bf16, (1, H2) f32
                w3_ref,               # VMEM (1, H2) f32
                b3_ref,               # SMEM (1,) f32
                o_ref):               # VMEM (TB, 1) f32
    # ---- fc1 (MXU, bf16 in / f32 acc) + relu + dropout ----
    h1 = jnp.dot(x_ref[...], w1_ref[...], preferred_element_type=jnp.float32)
    h1 = jnp.maximum(h1 + b1_ref[...], 0.0) * m1_ref[...]

    # ---- fc2 (MXU, bf16 in / f32 acc) + relu + dropout ----
    h2 = jnp.dot(h1.astype(jnp.bfloat16), w2_ref[...],
                 preferred_element_type=jnp.float32)
    h2 = jnp.maximum(h2 + b2_ref[...], 0.0) * m2_ref[...]

    # ---- out layer: N=1, so VPU multiply + lane reduce instead of MXU ----
    logits = jnp.sum(h2 * w3_ref[...], axis=-1, keepdims=True) + b3_ref[0]

    # ---- sigmoid ----
    o_ref[...] = 1.0 / (1.0 + jnp.exp(-logits))


def mlp_forward(x, params, dropout_key, *, tile_b=128):
    """x: (B, in_size) f32; params from init_params; dropout_key: jax PRNG key."""
    B, in_size = x.shape
    H = params["w1"].shape[1]
    H2 = params["w2"].shape[1]

    tile_b = min(tile_b, B)
    grid = (pl.cdiv(B, tile_b),)

    # Training-mode F.dropout(p=0.5): mask value 0.0 (dropped) or 2.0 (kept,
    # already scaled by 1/(1-p)).
    k1, k2 = jax.random.split(dropout_key)
    m1 = jax.random.bernoulli(k1, 0.5, (B, H)).astype(jnp.float32) * 2.0
    m2 = jax.random.bernoulli(k2, 0.5, (B, H2)).astype(jnp.float32) * 2.0

    x_bf16 = x.astype(jnp.bfloat16)

    return pl.pallas_call(
        _mlp_kernel,
        out_shape=jax.ShapeDtypeStruct((B, 1), jnp.float32),
        grid=grid,
        in_specs=[
            pl.BlockSpec((tile_b, in_size), lambda i: (i, 0)),   # x
            pl.BlockSpec((tile_b, H), lambda i: (i, 0)),         # mask1
            pl.BlockSpec((tile_b, H2), lambda i: (i, 0)),        # mask2
            pl.BlockSpec((in_size, H), lambda i: (0, 0)),        # w1 (resident)
            pl.BlockSpec((1, H), lambda i: (0, 0)),              # b1
            pl.BlockSpec((H, H2), lambda i: (0, 0)),             # w2
            pl.BlockSpec((1, H2), lambda i: (0, 0)),             # b2
            pl.BlockSpec((1, H2), lambda i: (0, 0)),             # w3 (row form)
            pl.BlockSpec(memory_space=pltpu.MemorySpace.SMEM),   # b3 scalar
        ],
        out_specs=pl.BlockSpec((tile_b, 1), lambda i: (i, 0)),
        compiler_params=pltpu.CompilerParams(
            dimension_semantics=("parallel",)),
    )(x_bf16, m1, m2,
      params["w1"], params["b1"],
      params["w2"], params["b2"],
      params["w3"], params["b3"])


def init_params(key, in_size, h_size):
    """Deterministic init mimicking nn.Linear's uniform(-1/sqrt(fan_in), +).

    Weights are stored as (in_features, out_features) so y = x @ W + b.
    w1/w2 are kept in bf16 (MXU operands); w3 is a (1, H/2) f32 row used by
    the VPU reduce; b3 is a (1,) f32 scalar that lives in SMEM.
    """
    h2 = h_size // 2
    ks = jax.random.split(key, 6)

    def lin(kw, kb, fan_in, fan_out):
        bound = 1.0 / math.sqrt(float(fan_in))
        w = jax.random.uniform(kw, (fan_in, fan_out), jnp.float32, -bound, bound)
        b = jax.random.uniform(kb, (1, fan_out), jnp.float32, -bound, bound)
        return w, b

    w1, b1 = lin(ks[0], ks[1], in_size, h_size)
    w2, b2 = lin(ks[2], ks[3], h_size, h2)
    w3, b3 = lin(ks[4], ks[5], h2, 1)

    return {
        "w1": w1.astype(jnp.bfloat16), "b1": b1,
        "w2": w2.astype(jnp.bfloat16), "b2": b2,
        "w3": w3.reshape(1, h2),                 # (1, H/2) f32 row
        "b3": b3.reshape(1),                     # (1,) f32 scalar -> SMEM
    }


if __name__ == "__main__":
    key = jax.random.PRNGKey(0)
    k_x, k_p, k_d = jax.random.split(key, 3)

    B, IN_SIZE, H_SIZE = 8, 32, 32
    x = jax.random.normal(k_x, (B, IN_SIZE), dtype=jnp.float32)
    params = init_params(k_p, IN_SIZE, H_SIZE)

    out = mlp_forward(x, params, k_d)
    out = jax.block_until_ready(out)

    assert out.shape == (B, 1)
    assert bool(jnp.all((out >= 0.0) & (out <= 1.0)))
    print("KERNEL_OK")
</pallas_src>

<mosaic_0001>
module attributes {stable_mosaic.version = 11 : i64} {
  func.func @_mlp_kernel(%arg0: i32, %arg1: memref<8x32xbf16, #tpu.memory_space<vmem>>, %arg2: memref<8x32xf32, #tpu.memory_space<vmem>>, %arg3: memref<8x16xf32, #tpu.memory_space<vmem>>, %arg4: memref<32x32xbf16, #tpu.memory_space<vmem>>, %arg5: memref<1x32xf32, #tpu.memory_space<vmem>>, %arg6: memref<32x16xbf16, #tpu.memory_space<vmem>>, %arg7: memref<1x16xf32, #tpu.memory_space<vmem>>, %arg8: memref<1x16xf32, #tpu.memory_space<vmem>>, %arg9: memref<1xf32, #tpu.memory_space<smem>>, %arg10: memref<8x1xf32, #tpu.memory_space<vmem>>) attributes {dimension_semantics = [#tpu.dimension_semantics<parallel>], iteration_bounds = array<i64: 1>, scalar_prefetch = 0 : i64, scratch_operands = 0 : i64, tpu.core_type = #tpu.core_type<tc>, window_params = [{transform_indices = @transform_0, window_bounds = array<i64: 8, 32>}, {transform_indices = @transform_1, window_bounds = array<i64: 8, 32>}, {transform_indices = @transform_2, window_bounds = array<i64: 8, 16>}, {pipeline_mode = #tpu.pipeline_mode<synchronous>, transform_indices = @transform_3, window_bounds = array<i64: 32, 32>}, {pipeline_mode = #tpu.pipeline_mode<synchronous>, transform_indices = @transform_4, window_bounds = array<i64: 1, 32>}, {pipeline_mode = #tpu.pipeline_mode<synchronous>, transform_indices = @transform_5, window_bounds = array<i64: 32, 16>}, {pipeline_mode = #tpu.pipeline_mode<synchronous>, transform_indices = @transform_6, window_bounds = array<i64: 1, 16>}, {pipeline_mode = #tpu.pipeline_mode<synchronous>, transform_indices = @transform_7, window_bounds = array<i64: 1, 16>}, {transform_indices = @transform_8, window_bounds = array<i64: 1>}, {transform_indices = @transform_9, window_bounds = array<i64: 8, 1>}]} {
    %c0 = arith.constant 0 : index
    %c0_0 = arith.constant 0 : index
    %0 = vector.load %arg1[%c0, %c0_0] : memref<8x32xbf16, #tpu.memory_space<vmem>>, vector<8x32xbf16>
    %c0_1 = arith.constant 0 : index
    %c0_2 = arith.constant 0 : index
    %1 = vector.load %arg4[%c0_1, %c0_2] : memref<32x32xbf16, #tpu.memory_space<vmem>>, vector<32x32xbf16>
    %cst = arith.constant dense<0.000000e+00> : vector<8x32xf32>
    %2 = tpu.matmul %0, %1, %cst {dimension_numbers = #tpu.dot_dimension_numbers<[1], [0], [0], [1], [0, 0, 1, 1], [], []>} : vector<8x32xbf16>, vector<32x32xbf16>, vector<8x32xf32> -> vector<8x32xf32>
    %c0_3 = arith.constant 0 : index
    %c0_4 = arith.constant 0 : index
    %3 = vector.load %arg5[%c0_3, %c0_4] : memref<1x32xf32, #tpu.memory_space<vmem>>, vector<1x32xf32>
    %4 = vector.broadcast %3 : vector<1x32xf32> to vector<8x32xf32>
    %5 = arith.addf %2, %4 : vector<8x32xf32>
    %cst_5 = arith.constant 0.000000e+00 : f32
    %6 = vector.broadcast %cst_5 : f32 to vector<8x32xf32>
    %7 = arith.maximumf %5, %6 : vector<8x32xf32>
    %c0_6 = arith.constant 0 : index
    %c0_7 = arith.constant 0 : index
    %8 = vector.load %arg2[%c0_6, %c0_7] : memref<8x32xf32, #tpu.memory_space<vmem>>, vector<8x32xf32>
    %9 = arith.mulf %7, %8 : vector<8x32xf32>
    %10 = arith.truncf %9 : vector<8x32xf32> to vector<8x32xbf16>
    %c0_8 = arith.constant 0 : index
    %c0_9 = arith.constant 0 : index
    %11 = vector.load %arg6[%c0_8, %c0_9] : memref<32x16xbf16, #tpu.memory_space<vmem>>, vector<32x16xbf16>
    %cst_10 = arith.constant dense<0.000000e+00> : vector<8x16xf32>
    %12 = tpu.matmul %10, %11, %cst_10 {dimension_numbers = #tpu.dot_dimension_numbers<[1], [0], [0], [1], [0, 0, 1, 1], [], []>} : vector<8x32xbf16>, vector<32x16xbf16>, vector<8x16xf32> -> vector<8x16xf32>
    %c0_11 = arith.constant 0 : index
    %c0_12 = arith.constant 0 : index
    %13 = vector.load %arg7[%c0_11, %c0_12] : memref<1x16xf32, #tpu.memory_space<vmem>>, vector<1x16xf32>
    %14 = vector.broadcast %13 : vector<1x16xf32> to vector<8x16xf32>
    %15 = arith.addf %12, %14 : vector<8x16xf32>
    %cst_13 = arith.constant 0.000000e+00 : f32
    %16 = vector.broadcast %cst_13 : f32 to vector<8x16xf32>
    %17 = arith.maximumf %15, %16 : vector<8x16xf32>
    %c0_14 = arith.constant 0 : index
    %c0_15 = arith.constant 0 : index
    %18 = vector.load %arg3[%c0_14, %c0_15] : memref<8x16xf32, #tpu.memory_space<vmem>>, vector<8x16xf32>
    %19 = arith.mulf %17, %18 : vector<8x16xf32>
    %c0_16 = arith.constant 0 : index
    %c0_17 = arith.constant 0 : index
    %20 = vector.load %arg8[%c0_16, %c0_17] : memref<1x16xf32, #tpu.memory_space<vmem>>, vector<1x16xf32>
    %21 = vector.broadcast %20 : vector<1x16xf32> to vector<8x16xf32>
    %22 = arith.mulf %19, %21 : vector<8x16xf32>
    %cst_18 = arith.constant dense<0.000000e+00> : vector<8xf32>
    %23 = vector.multi_reduction <add>, %22, %cst_18 [1] : vector<8x16xf32> to vector<8xf32>
    %24 = vector.shape_cast %23 : vector<8xf32> to vector<8x1xf32>
    %c0_19 = arith.constant 0 : index
    %25 = memref.load %arg9[%c0_19] : memref<1xf32, #tpu.memory_space<smem>>
    %26 = vector.broadcast %25 : f32 to vector<8x1xf32>
    %27 = arith.addf %24, %26 : vector<8x1xf32>
    %cst_20 = arith.constant 0.000000e+00 : f32
    %28 = vector.broadcast %cst_20 : f32 to vector<8x1xf32>
    %29 = arith.subf %28, %27 : vector<8x1xf32>
    %30 = math.exp %29 : vector<8x1xf32>
    %cst_21 = arith.constant 1.000000e+00 : f32
    %31 = vector.broadcast %cst_21 : f32 to vector<8x1xf32>
    %32 = arith.addf %31, %30 : vector<8x1xf32>
    %cst_22 = arith.constant 1.000000e+00 : f32
    %33 = vector.broadcast %cst_22 : f32 to vector<8x1xf32>
    %34 = arith.divf %33, %32 : vector<8x1xf32>
    %c0_23 = arith.constant 0 : index
    %c0_24 = arith.constant 0 : index
    %35 = vector.load %arg10[%c0_23, %c0_24] : memref<8x1xf32, #tpu.memory_space<vmem>>, vector<8x1xf32>
    tpu.vector_store %arg10[%c0_23, %c0_24], %34 {strides = array<i32>} : memref<8x1xf32, #tpu.memory_space<vmem>>, vector<8x1xf32>,
    return
  }
  func.func @transform_0(%arg0: i32) -> (i32, i32) {
    %c0_i32 = arith.constant 0 : i32
    %c0_i32_0 = arith.constant 0 : i32
    return %arg0, %c0_i32 : i32, i32
  }
  func.func @transform_1(%arg0: i32) -> (i32, i32) {
    %c0_i32 = arith.constant 0 : i32
    %c0_i32_0 = arith.constant 0 : i32
    return %arg0, %c0_i32 : i32, i32
  }
  func.func @transform_2(%arg0: i32) -> (i32, i32) {
    %c0_i32 = arith.constant 0 : i32
    %c0_i32_0 = arith.constant 0 : i32
    return %arg0, %c0_i32 : i32, i32
  }
  func.func @transform_3(%arg0: i32) -> (i32, i32) {
    %c0_i32 = arith.constant 0 : i32
    %c0_i32_0 = arith.constant 0 : i32
    %c0_i32_1 = arith.constant 0 : i32
    return %c0_i32, %c0_i32_0 : i32, i32
  }
  func.func @transform_4(%arg0: i32) -> (i32, i32) {
    %c0_i32 = arith.constant 0 : i32
    %c0_i32_0 = arith.constant 0 : i32
    %c0_i32_1 = arith.constant 0 : i32
    return %c0_i32, %c0_i32_0 : i32, i32
  }
  func.func @transform_5(%arg0: i32) -> (i32, i32) {
    %c0_i32 = arith.constant 0 : i32
    %c0_i32_0 = arith.constant 0 : i32
    %c0_i32_1 = arith.constant 0 : i32
    return %c0_i32, %c0_i32_0 : i32, i32
  }
  func.func @transform_6(%arg0: i32) -> (i32, i32) {
    %c0_i32 = arith.constant 0 : i32
    %c0_i32_0 = arith.constant 0 : i32
    %c0_i32_1 = arith.constant 0 : i32
    return %c0_i32, %c0_i32_0 : i32, i32
  }
  func.func @transform_7(%arg0: i32) -> (i32, i32) {
    %c0_i32 = arith.constant 0 : i32
    %c0_i32_0 = arith.constant 0 : i32
    %c0_i32_1 = arith.constant 0 : i32
    return %c0_i32, %c0_i32_0 : i32, i32
  }
  func.func @transform_8(%arg0: i32) -> i32 {
    %c0_i32 = arith.constant 0 : i32
    %c0_i32_0 = arith.constant 0 : i32
    return %c0_i32 : i32
  }
  func.func @transform_9(%arg0: i32) -> (i32, i32) {
    %c0_i32 = arith.constant 0 : i32
    %c0_i32_0 = arith.constant 0 : i32
    return %arg0, %c0_i32 : i32, i32
  }
}

</mosaic_0001>

<llo_original>
// kernel: tpu_custom_call.1
$region0: #{tpu_custom_call.1}
  #allocation0 [shape = 'u32[]', space=smem, size = 0x4, offset = 0x4, fixed_abs, tag = 'smem constant byte address 0x4 - core index']
  #allocation1 [shape = 'u32[144,128]{1,0:T(1,128)}', space=vmem, size = 0x12000, scoped, tag = 'internal scratch']
  #allocation2 [shape = 'f32[1]{0:T(128)S(6)}', space=smem, size = 0x200, scoped, tag = 'scoped memory for tpu_custom_call.1']
  %s0 = inlined_call_operand.hbm [shape: bf16[8,32], index: 0, kind: input, shape index: {}]
  %s1 = inlined_call_operand.vmem [shape: f32[8,32], index: 1, kind: input, shape index: {}]
  %s2 = inlined_call_operand.hbm [shape: f32[8,16], index: 2, kind: input, shape index: {}]
  %s3 = inlined_call_operand.vmem [shape: bf16[32,32], index: 3, kind: input, shape index: {}]
  %s4 = inlined_call_operand.vmem [shape: f32[1,32], index: 4, kind: input, shape index: {}]
  %s5 = inlined_call_operand.vmem [shape: bf16[32,16], index: 5, kind: input, shape index: {}]
  %s6 = inlined_call_operand.vmem [shape: f32[1,16], index: 6, kind: input, shape index: {}]
  %s7 = inlined_call_operand.vmem [shape: f32[1,16], index: 7, kind: input, shape index: {}]
  %s8 = inlined_call_operand.<no memory space> [shape: f32[1], index: 8, kind: input, shape index: {}]
  %s9 = inlined_call_operand.vmem [shape: f32[8,1], index: 9, kind: output, shape index: {}]
  %s10 = sld [smem:[#allocation0]]
  $region54: #{tpu_custom_call.1} parent=0
    _
  %s12 = ssub.s32 1, %s10
  %s13 = scalar_select 0, %s12, %s10
  %14 = sst [smem:[#allocation2]] %s8
  $region1: #{tpu_custom_call.1} parent=0
    #allocation3 [shape = 'u8[2048]{0}', space=vmem, size = 0x800, scoped, tag = 'input window, operand 0, single buffered']
    #allocation4 [shape = 's32[1]{0}', space=sflag, size = 0x4, scoped, tag = 'scoped memory for tpu_custom_call.1']
    #allocation5 [shape = 'u8[4096]{0}', space=vmem, size = 0x1000, scoped, tag = 'input window, operand 2, single buffered']
    #allocation6 [shape = 's32[1]{0}', space=sflag, size = 0x4, scoped, tag = 'scoped memory for tpu_custom_call.1']
    %15 = vsyncpa [#allocation4], 0
    %16 = vsyncpa [#allocation6], 0
    // Predicated region
    $region2: #{tpu_custom_call.1} parent=1 // pred_check
      _
    $region3: #{tpu_custom_call.1} parent=1 // pred_check_branch
      %18 = sbr.rel (0) target = $region5
    $region4: #{tpu_custom_call.1} parent=1 // pred_region
      %s20 = ssub.s32 64, 64
      %21 = vsyncadd [#allocation4], %s20
      %s23 = sshll.u32 [#allocation3], 4
      %s24 = int_to_ptr.vmem [resolvable:$true] %s23
      %26 = dma.hbm_to_vmem [thread:$0]  %s0, 64, %s24, [#allocation4]
    $region5: #{tpu_custom_call.1} parent=1 // pred_fallthru
      _
    // Predicated region
    $region6: #{tpu_custom_call.1} parent=1 // pred_check
      _
    $region7: #{tpu_custom_call.1} parent=1 // pred_check_branch
      %28 = sbr.rel (0) target = $region9
    $region8: #{tpu_custom_call.1} parent=1 // pred_region
      _
    $region9: #{tpu_custom_call.1} parent=1 // pred_fallthru
      _
    // Predicated region
    $region10: #{tpu_custom_call.1} parent=1 // pred_check
      _
    $region11: #{tpu_custom_call.1} parent=1 // pred_check_branch
      %30 = sbr.rel (0) target = $region13
    $region12: #{tpu_custom_call.1} parent=1 // pred_region
      %s32 = ssub.s32 128, 128
      %33 = vsyncadd [#allocation6], %s32
      %s35 = sshll.u32 [#allocation5], 4
      %s36 = int_to_ptr.vmem [resolvable:$true] %s35
      %38 = dma.hbm_to_vmem [thread:$0]  %s2, 128, %s36, [#allocation6]
    $region13: #{tpu_custom_call.1} parent=1 // pred_fallthru
      _
    // Predicated region
    $region14: #{tpu_custom_call.1} parent=1 // pred_check
      _
    $region15: #{tpu_custom_call.1} parent=1 // pred_check_branch
      %40 = sbr.rel (0) target = $region17
    $region16: #{tpu_custom_call.1} parent=1 // pred_region
      _
    $region17: #{tpu_custom_call.1} parent=1 // pred_fallthru
      _
    // Predicated region
    $region18: #{tpu_custom_call.1} parent=1 // pred_check
      _
    $region19: #{tpu_custom_call.1} parent=1 // pred_check_branch
      %42 = sbr.rel (0) target = $region21
    $region20: #{tpu_custom_call.1} parent=1 // pred_region
      _
    $region21: #{tpu_custom_call.1} parent=1 // pred_fallthru
      _
    // Predicated region
    $region22: #{tpu_custom_call.1} parent=1 // pred_check
      _
    $region23: #{tpu_custom_call.1} parent=1 // pred_check_branch
      %44 = sbr.rel (0) target = $region25
    $region24: #{tpu_custom_call.1} parent=1 // pred_region
      _
    $region25: #{tpu_custom_call.1} parent=1 // pred_fallthru
      _
    // Predicated region
    $region26: #{tpu_custom_call.1} parent=1 // pred_check
      _
    $region27: #{tpu_custom_call.1} parent=1 // pred_check_branch
      %46 = sbr.rel (0) target = $region29
    $region28: #{tpu_custom_call.1} parent=1 // pred_region
      _
    $region29: #{tpu_custom_call.1} parent=1 // pred_fallthru
      _
    // Predicated region
    $region30: #{tpu_custom_call.1} parent=1 // pred_check
      _
    $region31: #{tpu_custom_call.1} parent=1 // pred_check_branch
      %48 = sbr.rel (0) target = $region33
    $region32: #{tpu_custom_call.1} parent=1 // pred_region
      _
    $region33: #{tpu_custom_call.1} parent=1 // pred_fallthru
      _
    // Predicated region
    $region34: #{tpu_custom_call.1} parent=1 // pred_check
      _
    $region35: #{tpu_custom_call.1} parent=1 // pred_check_branch
      %50 = sbr.rel (0) target = $region37
    $region36: #{tpu_custom_call.1} parent=1 // pred_region
      _
    $region37: #{tpu_custom_call.1} parent=1 // pred_fallthru
      _
    // Predicated region
    $region38: #{tpu_custom_call.1} parent=1 // pred_check
      _
    $region39: #{tpu_custom_call.1} parent=1 // pred_check_branch
      %52 = sbr.rel (0) target = $region41
    $region40: #{tpu_custom_call.1} parent=1 // pred_region
      %53 = dma.done [#allocation4], 64
    $region41: #{tpu_custom_call.1} parent=1 // pred_fallthru
      _
    // Predicated region
    $region42: #{tpu_custom_call.1} parent=1 // pred_check
      _
    $region43: #{tpu_custom_call.1} parent=1 // pred_check_branch
      %55 = sbr.rel (0) target = $region45
    $region44: #{tpu_custom_call.1} parent=1 // pred_region
      %56 = dma.done [#allocation6], 128
    $region45: #{tpu_custom_call.1} parent=1 // pred_fallthru
      _
    %v58 = vld [vmem:[#allocation3] sm:$0xf]
    %v59 = vld [vmem:[%s3] sm:$0xf]
    %v60 = vld [vmem:[%s3 + $0x4] sm:$0xf]
    %v61 = vld [vmem:[%s3 + $0x8] sm:$0xf]
    %v62 = vld [vmem:[%s3 + $0xc] sm:$0xf]
    %v63 = vld [vmem:[%s4] sm:$0x1]
    %v65 = vlaneseq
    %v66 = vshrl.u32 %v65, 7
    %v67 = vsub.s32 0, %v66
    %v68 = vrot.slane %v63, %v67
    %v74 = vunpack.c.l.b16 %v59
    %v75 = vunpack.c.l.b16 %v60
    %v76 = vunpack.c.l.b16 %v61
    %v77 = vunpack.c.l.b16 %v62
    %v78 = vpack.c.b16 %v75, %v74
    %v79 = vpack.c.b16 %v77, %v76
    %vm82 = vcmask 261120
    %v84 = vsel %vm82, %v58, 0
    %86 = vmatprep.subr.bf16.mxu0 0
    %87 = vmatpush1.bf16.msra.mxu0 0
    %88 = vmatprep.subr.bf16.mxu0 0
    %89 = vmatpush1.bf16.msra.mxu0 0
    %90 = vmatprep.subr.bf16.mxu0 0
    %91 = vmatpush1.bf16.msra.mxu0 0
    %92 = vmatprep.subr.bf16.mxu0 0
    %93 = vmatpush1.bf16.msra.mxu0 0
    %94 = vmatprep.subr.bf16.mxu0 0
    %95 = vmatpush1.bf16.msra.mxu0 0
    %96 = vmatprep.subr.bf16.mxu0 0
    %97 = vmatpush1.bf16.msra.mxu0 0
    %98 = vmatprep.subr.bf16.mxu0 0
    %99 = vmatpush1.bf16.msra.mxu0 %v79
    %100 = vmatprep.subr.bf16.mxu0 0
    %101 = vmatpush1.bf16.msra.mxu0 %v78
    %102 = vmatprep.subr.bf16.mxu0 0
    %103 = vmatpush2.bf16.msra.mxu0 0
    %104 = vmatprep.subr.bf16.mxu0 0
    %105 = vmatpush2.bf16.msra.mxu0 0
    %106 = vmatprep.subr.bf16.mxu0 0
    %107 = vmatpush2.bf16.msra.mxu0 0
    %108 = vmatprep.subr.bf16.mxu0 0
    %109 = vmatpush2.bf16.msra.mxu0 0
    %110 = vmatprep.subr.bf16.mxu0 0
    %111 = vmatpush2.bf16.msra.mxu0 0
    %112 = vmatprep.subr.bf16.mxu0 0
    %113 = vmatpush2.bf16.msra.mxu0 0
    %114 = vmatprep.subr.bf16.mxu0 0
    %115 = vmatpush2.bf16.msra.mxu0 0
    %116 = vmatprep.subr.bf16.mxu0 0
    %117 = vmatpush2.bf16.msra.mxu0 0
    %118 = vmatprep.mubr.bf16.mxu0 0
    %119 = vmatmul.mubr.bf16.gmra.mxu0 %v84
    %v120 = vpop.f32.mrf.mxu0
    %v121 = vadd.f32 %v68, %v120
    %v122 = vpop.f32.mrf.mxu0
    %v123 = vpop.f32.mrf.mxu0
    %v124 = vpop.f32.mrf.mxu0
    %125 = vdwg.mxu0
    %v126 = vmax.f32 %v121, 0.0
    %v127 = vld [vmem:[%s1] sm:$0xff]
    %v128 = vmul.f32 %v126, %v127
    %v129 = vpack.c.bf16 %v128, %v128
    %v130 = vld [vmem:[%s5] sm:$0xf]
    %v131 = vld [vmem:[%s5 + $0x4] sm:$0xf]
    %v132 = vld [vmem:[%s5 + $0x8] sm:$0xf]
    %v133 = vld [vmem:[%s5 + $0xc] sm:$0xf]
    %v134 = vld [vmem:[%s6] sm:$0x1]
    %v136 = vlaneseq
    %v137 = vshrl.u32 %v136, 7
    %v138 = vsub.s32 0, %v137
    %v139 = vrot.slane %v134, %v138
    %v145 = vunpack.c.l.b16 %v130
    %v146 = vunpack.c.l.b16 %v131
    %v147 = vunpack.c.l.b16 %v132
    %v148 = vunpack.c.l.b16 %v133
    %v149 = vpack.c.b16 %v146, %v145
    %v150 = vpack.c.b16 %v148, %v147
    %v154 = vsel %vm82, %v129, 0
    %156 = vmatprep.subr.bf16.mxu0 0
    %157 = vmatpush1.bf16.msra.mxu0 0
    %158 = vmatprep.subr.bf16.mxu0 0
    %159 = vmatpush1.bf16.msra.mxu0 0
    %160 = vmatprep.subr.bf16.mxu0 0
    %161 = vmatpush1.bf16.msra.mxu0 0
    %162 = vmatprep.subr.bf16.mxu0 0
    %163 = vmatpush1.bf16.msra.mxu0 0
    %164 = vmatprep.subr.bf16.mxu0 0
    %165 = vmatpush1.bf16.msra.mxu0 0
    %166 = vmatprep.subr.bf16.mxu0 0
    %167 = vmatpush1.bf16.msra.mxu0 0
    %168 = vmatprep.subr.bf16.mxu0 0
    %169 = vmatpush1.bf16.msra.mxu0 %v150
    %170 = vmatprep.subr.bf16.mxu0 0
    %171 = vmatpush1.bf16.msra.mxu0 %v149
    %172 = vmatprep.subr.bf16.mxu0 0
    %173 = vmatpush2.bf16.msra.mxu0 0
    %174 = vmatprep.subr.bf16.mxu0 0
    %175 = vmatpush2.bf16.msra.mxu0 0
    %176 = vmatprep.subr.bf16.mxu0 0
    %177 = vmatpush2.bf16.msra.mxu0 0
    %178 = vmatprep.subr.bf16.mxu0 0
    %179 = vmatpush2.bf16.msra.mxu0 0
    %180 = vmatprep.subr.bf16.mxu0 0
    %181 = vmatpush2.bf16.msra.mxu0 0
    %182 = vmatprep.subr.bf16.mxu0 0
    %183 = vmatpush2.bf16.msra.mxu0 0
    %184 = vmatprep.subr.bf16.mxu0 0
    %185 = vmatpush2.bf16.msra.mxu0 0
    %186 = vmatprep.subr.bf16.mxu0 0
    %187 = vmatpush2.bf16.msra.mxu0 0
    %188 = vmatprep.mubr.bf16.mxu0 0
    %189 = vmatmul.mubr.bf16.gmra.mxu0 %v154
    %v190 = vpop.f32.mrf.mxu0
    %v191 = vadd.f32 %v139, %v190
    %v192 = vpop.f32.mrf.mxu0
    %v193 = vpop.f32.mrf.mxu0
    %v194 = vpop.f32.mrf.mxu0
    %195 = vdwg.mxu0
    %v196 = vmax.f32 %v191, 0.0
    %v197 = vld [vmem:[#allocation5] sm:$0xff]
    %v198 = vmul.f32 %v196, %v197
    %v199 = vld [vmem:[%s7] sm:$0x1]
    %v201 = vlaneseq
    %v202 = vshrl.u32 %v201, 7
    %v203 = vsub.s32 0, %v202
    %v204 = vrot.slane %v199, %v203
    %v206 = vmul.f32 %v198, %v204
    %vm207 = vcmask 130048
    %v208 = vsel %vm207, %v206, 0.0
    %209 = vadd.xlane.f32.xlu0 %v208
    %v210 = vpop.xlane.xlu0 %209
    %s211 = sld [smem:[#allocation2]]
    %v212 = vstv %s211
    %v213 = vadd.f32 %v210, %v212
    %v214 = vsub.f32 0.0, %v213
    %v215 = vmul.f32 %v214, 1.442695
    %v216 = vpow.pop %v215
    %v217 = vadd.f32 %v216, 1.0
    %v218 = vrcp.pop %v217
    %v219 = vmul.f32 1.0, %v218
    %vm220 = vcmask 7168
    %221 = vst.msk [vmem:[%s9] sm:$0xff] %vm220, %v219
    // Predicated region
    $region46: #{tpu_custom_call.1} parent=1 // pred_check
      _
    $region47: #{tpu_custom_call.1} parent=1 // pred_check_branch
      %223 = sbr.rel (0) target = $region49
    $region48: #{tpu_custom_call.1} parent=1 // pred_region
      _
    $region49: #{tpu_custom_call.1} parent=1 // pred_fallthru
      _
    // Predicated region
    $region50: #{tpu_custom_call.1} parent=1 // pred_check
      _
    $region51: #{tpu_custom_call.1} parent=1 // pred_check_branch
      %225 = sbr.rel (0) target = $region53
    $region52: #{tpu_custom_call.1} parent=1 // pred_region
      _
    $region53: #{tpu_custom_call.1} parent=1 // pred_fallthru
      _
    %226 = vsyncpa [#allocation4], 1
    %227 = vsyncpa [#allocation6], 1

</llo_original>
